<compile_context>
chip_gen: v6e
topology: v6e:2x2x1
jax: 0.10.0
libtpu: 0.0.40
codegen_flags: <defaults>
</compile_context>

<pallas_src>
import functools

import jax
import jax.numpy as jnp
from jax.experimental import pallas as pl
from jax.experimental.pallas import tpu as pltpu

_EPS = 1e-5
_LEAKY_SLOPE = 0.01

_MAX_TILE = 2048                       # lanes per streamed spatial tile (mult of 128)
_VMEM_FLOOR = 24 * 1024 * 1024
_VMEM_CEIL = 48 * 1024 * 1024          # stays below v7x's 64 MiB physical VMEM


def _vmem_limit(nbytes):
    return int(min(max(nbytes, _VMEM_FLOOR), _VMEM_CEIL))


def _leaky_relu(x, slope):
    return jnp.where(x >= 0, x, slope * x)


def _batchnorm1d_train(x, gamma, beta):
    # PyTorch BatchNorm1d forward (training mode): batch stats, biased var, eps=1e-5.
    mu = jnp.mean(x, axis=0, keepdims=True)
    var = jnp.mean((x - mu) * (x - mu), axis=0, keepdims=True)
    return (x - mu) * jax.lax.rsqrt(var + _EPS) * gamma + beta


def make_params(key, in_channels, d_feat=2048, d_hidden=1024):
    """Deterministic parameter init mirroring the PyTorch module's __init__."""
    k0, k1, kb1, k2, kb2 = jax.random.split(key, 5)

    # backbone stand-in projection (normal(0, 0.02), like Conv/Linear init)
    w0 = 0.02 * jax.random.normal(k0, (in_channels, d_feat), jnp.float32)

    # BatchNorm1d(2048): weight=1, bias=0
    g1 = jnp.ones((1, d_feat), jnp.float32)
    b1 = jnp.zeros((1, d_feat), jnp.float32)

    # Linear(2048, 1024): weight ~ N(0, 0.02); bias keeps default U(-1/sqrt(in), ..)
    w1 = 0.02 * jax.random.normal(k1, (d_feat, d_hidden), jnp.float32)
    bound1 = 1.0 / jnp.sqrt(jnp.float32(d_feat))
    wb1 = jax.random.uniform(kb1, (1, d_hidden), jnp.float32, -bound1, bound1)

    # BatchNorm1d(1024): weight=1, bias=0
    g2 = jnp.ones((1, d_hidden), jnp.float32)
    b2 = jnp.zeros((1, d_hidden), jnp.float32)

    # Linear(1024, 1)
    w2 = 0.02 * jax.random.normal(k2, (d_hidden, 1), jnp.float32)
    bound2 = 1.0 / jnp.sqrt(jnp.float32(d_hidden))
    wb2 = jax.random.uniform(kb2, (1, 1), jnp.float32, -bound2, bound2)

    return (w0, g1, b1, w1, wb1, g2, b2, w2, wb2)


# --------------------- Kernel 1: streamed global average pool ---------------------

def _pool_kernel(x_ref, o_ref, acc_ref, *, num_tiles, t_hw, hw, ragged, inv_hw):
    k = pl.program_id(0)

    @pl.when(k == 0)
    def _():
        acc_ref[...] = jnp.zeros_like(acc_ref)

    x = x_ref[...]                                           # (NC, t_hw) f32
    if ragged:
        # Mask out-of-range lanes of the last (partial) tile; padded VMEM may be
        # garbage (even NaN), so select (not multiply) against it.
        lane = jax.lax.broadcasted_iota(jnp.int32, (1, t_hw), 1) + k * t_hw
        x = jnp.where(lane < hw, x, 0.0)
    acc_ref[...] += x                                        # pure VPU adds per step

    @pl.when(k == num_tiles - 1)
    def _():
        # One cross-lane reduction + scale at the very end.
        o_ref[...] = (jnp.sum(acc_ref[...], axis=-1, keepdims=True)
                      * jnp.float32(inv_hw))


def _global_avg_pool(x):
    """x: (N, C, H, W) f32 -> (N, C) f32 via a streamed Pallas kernel."""
    N, C, H, W = x.shape
    HW = H * W
    NC = N * C
    # Free layout: collapse contiguous dims, H*W on lanes. No transpose, no pad.
    x2 = x.reshape(NC, HW).astype(jnp.float32)

    if HW <= _MAX_TILE:
        t_hw = HW                        # full-extent block: no (8,128) constraint
    else:
        t_hw = _MAX_TILE                 # multiple of 128
        # Shrink only if (2x double-buffered tile + accumulator) would be large.
        while t_hw > 128 and 3 * NC * t_hw * 4 > 16 * 1024 * 1024:
            t_hw //= 2
    num_tiles = pl.cdiv(HW, t_hw)
    ragged = (HW % t_hw) != 0

    kernel = functools.partial(_pool_kernel, num_tiles=num_tiles, t_hw=t_hw,
                               hw=HW, ragged=ragged, inv_hw=1.0 / float(HW))

    tile_bytes = NC * t_hw * 4
    cost = pl.CostEstimate(flops=NC * HW, transcendentals=0,
                           bytes_accessed=NC * HW * 4 + NC * 4)

    out = pl.pallas_call(
        kernel,
        out_shape=jax.ShapeDtypeStruct((NC, 1), jnp.float32),
        grid_spec=pltpu.PrefetchScalarGridSpec(
            num_scalar_prefetch=0,
            grid=(num_tiles,),
            in_specs=[pl.BlockSpec((NC, t_hw), lambda k: (0, k))],
            out_specs=pl.BlockSpec((NC, 1), lambda k: (0, 0)),
            scratch_shapes=[pltpu.VMEM((NC, t_hw), jnp.float32)],
        ),
        compiler_params=pltpu.CompilerParams(
            dimension_semantics=("arbitrary",),
            vmem_limit_bytes=_vmem_limit(3 * tile_bytes + (1 << 20)),
        ),
        cost_estimate=cost,
    )(x2)
    return out.reshape(N, C)


# ----------------------------- Kernel 2: fclayers head -----------------------------

def _head_kernel(pooled_ref, w0_ref, g1_ref, b1_ref, w1_ref, wb1_ref,
                 g2_ref, b2_ref, w2_ref, wb2_ref, o_ref):
    pooled = pooled_ref[...]                                   # (N, C) f32

    # backbone stand-in projection C -> 2048 (bf16 operands, f32 MXU accumulation)
    feat = jnp.dot(pooled.astype(jnp.bfloat16), w0_ref[...],
                   preferred_element_type=jnp.float32)         # (N, 2048)

    h = _batchnorm1d_train(feat, g1_ref[...], b1_ref[...])
    h = _leaky_relu(h, _LEAKY_SLOPE)

    h = jnp.dot(h.astype(jnp.bfloat16), w1_ref[...],
                preferred_element_type=jnp.float32) + wb1_ref[...]

    h = _batchnorm1d_train(h, g2_ref[...], b2_ref[...])
    h = _leaky_relu(h, _LEAKY_SLOPE)

    # Linear(1024, 1) as VPU multiply + lane reduction (avoids a 1-column MXU matmul).
    logits = jnp.sum(h * w2_ref[...], axis=-1, keepdims=True) + wb2_ref[...]
    o_ref[...] = jax.nn.sigmoid(logits)


def _head(pooled, params):
    w0, g1, b1, w1, wb1, g2, b2, w2, wb2 = params
    N, C = pooled.shape
    d_feat = w0.shape[1]
    d_hidden = w1.shape[1]

    # bf16 matmul weights (f32 accumulation in-kernel); BN params stay f32.
    w0b = w0.astype(jnp.bfloat16)
    w1b = w1.astype(jnp.bfloat16)
    w2row = w2.reshape(1, d_hidden).astype(jnp.float32)
    wb2m = wb2.reshape(1, 1).astype(jnp.float32)
    weight_args = (w0b, g1, b1, w1b, wb1, g2, b2, w2row, wb2m)

    def full_spec(a):
        nd = a.ndim
        return pl.BlockSpec(a.shape, lambda i, nd=nd: (0,) * nd)

    param_bytes = sum(int(a.size) * a.dtype.itemsize for a in weight_args)
    act_bytes = 4 * max(N, 8) * (C + 2 * d_feat + 2 * d_hidden) * 4
    vmem = _vmem_limit(2 * param_bytes + act_bytes + (2 << 20))

    cost = pl.CostEstimate(
        flops=2 * N * (C * d_feat + d_feat * d_hidden + d_hidden),
        transcendentals=2 * N,
        bytes_accessed=param_bytes + N * C * 4 + N * 4,
    )

    return pl.pallas_call(
        _head_kernel,
        out_shape=jax.ShapeDtypeStruct((N, 1), jnp.float32),
        grid_spec=pltpu.PrefetchScalarGridSpec(
            num_scalar_prefetch=0,
            grid=(1,),
            in_specs=[full_spec(pooled)] + [full_spec(a) for a in weight_args],
            out_specs=pl.BlockSpec((N, 1), lambda i: (0, 0)),
        ),
        compiler_params=pltpu.CompilerParams(
            dimension_semantics=("arbitrary",),
            vmem_limit_bytes=vmem,
        ),
        cost_estimate=cost,
    )(pooled, *weight_args)


def discriminator_for_image(x, params):
    """x: (N, C, H, W) float32 -> (N, 1) float32 in (0, 1)."""
    pooled = _global_avg_pool(x)
    return _head(pooled, params)


# ----------------------------------- reference -----------------------------------

def _reference(x, params):
    """Plain-JAX reference with identical (bf16-matmul / f32-BN) numerics."""
    w0, g1, b1, w1, wb1, g2, b2, w2, wb2 = params
    N, C, H, W = x.shape
    pooled = jnp.mean(x.reshape(N, C, H * W), axis=-1)
    feat = jnp.dot(pooled.astype(jnp.bfloat16), w0.astype(jnp.bfloat16),
                   preferred_element_type=jnp.float32)
    h = _batchnorm1d_train(feat, g1, b1)
    h = _leaky_relu(h, _LEAKY_SLOPE)
    h = jnp.dot(h.astype(jnp.bfloat16), w1.astype(jnp.bfloat16),
                preferred_element_type=jnp.float32) + wb1
    h = _batchnorm1d_train(h, g2, b2)
    h = _leaky_relu(h, _LEAKY_SLOPE)
    logits = h @ w2 + wb2
    return jax.nn.sigmoid(logits)


if __name__ == "__main__":
    key = jax.random.PRNGKey(0)
    kx, kx2, kp = jax.random.split(key, 3)

    # Small NCHW input, consistent with an image discriminator.
    N, C, H, W = 2, 4, 16, 16
    x = jax.random.normal(kx, (N, C, H, W), jnp.float32)
    params = make_params(kp, in_channels=C)

    out = jax.block_until_ready(discriminator_for_image(x, params))
    ref = _reference(x, params)
    assert out.shape == (N, 1)
    assert bool(jnp.all(jnp.isfinite(out)))
    assert jnp.allclose(out, ref, atol=2e-3, rtol=2e-3), (out, ref)

    # Also exercise the multi-tile streamed path with a ragged last spatial tile
    # (H*W = 2304 -> one full 2048-lane tile + one masked partial tile).
    H2 = W2 = 48
    x2 = jax.random.normal(kx2, (N, C, H2, W2), jnp.float32)
    out2 = jax.block_until_ready(discriminator_for_image(x2, params))
    ref2 = _reference(x2, params)
    assert out2.shape == (N, 1)
    assert bool(jnp.all(jnp.isfinite(out2)))
    assert jnp.allclose(out2, ref2, atol=2e-3, rtol=2e-3), (out2, ref2)

    print("KERNEL_OK")
</pallas_src>

<mosaic_0001>
module attributes {stable_mosaic.version = 11 : i64} {
  func.func @_pool_kernel(%arg0: i32, %arg1: memref<8x256xf32, #tpu.memory_space<vmem>>, %arg2: memref<8x1xf32, #tpu.memory_space<vmem>>, %arg3: memref<8x256xf32, #tpu.memory_space<vmem>>) attributes {dimension_semantics = [#tpu.dimension_semantics<arbitrary>], iteration_bounds = array<i64: 1>, scalar_prefetch = 0 : i64, scratch_operands = 1 : i64, tpu.core_type = #tpu.core_type<tc>, window_params = [{transform_indices = @transform_0, window_bounds = array<i64: 8, 256>}, {pipeline_mode = #tpu.pipeline_mode<synchronous>, transform_indices = @transform_1, window_bounds = array<i64: 8, 1>}]} {
    %c0_i32 = arith.constant 0 : i32
    %0 = arith.cmpi eq, %arg0, %c0_i32 : i32
    %1 = arith.extui %0 : i1 to i32
    %c0_i32_0 = arith.constant 0 : i32
    %2 = arith.cmpi ne, %1, %c0_i32_0 : i32
    scf.if %2 {
      %cst = arith.constant 0.000000e+00 : f32
      %10 = vector.broadcast %cst : f32 to vector<8x256xf32>
      %c0_8 = arith.constant 0 : index
      %c0_9 = arith.constant 0 : index
      %11 = vector.load %arg3[%c0_8, %c0_9] : memref<8x256xf32, #tpu.memory_space<vmem>>, vector<8x256xf32>
      tpu.vector_store %arg3[%c0_8, %c0_9], %10 {strides = array<i32>} : memref<8x256xf32, #tpu.memory_space<vmem>>, vector<8x256xf32>,
    } else {
    }
    %c0 = arith.constant 0 : index
    %c0_1 = arith.constant 0 : index
    %3 = vector.load %arg1[%c0, %c0_1] : memref<8x256xf32, #tpu.memory_space<vmem>>, vector<8x256xf32>
    %c0_2 = arith.constant 0 : index
    %c0_3 = arith.constant 0 : index
    %4 = vector.load %arg3[%c0_2, %c0_3] : memref<8x256xf32, #tpu.memory_space<vmem>>, vector<8x256xf32>
    %5 = arith.addf %4, %3 : vector<8x256xf32>
    %c0_4 = arith.constant 0 : index
    %c0_5 = arith.constant 0 : index
    %6 = vector.load %arg3[%c0_4, %c0_5] : memref<8x256xf32, #tpu.memory_space<vmem>>, vector<8x256xf32>
    tpu.vector_store %arg3[%c0_4, %c0_5], %5 {strides = array<i32>} : memref<8x256xf32, #tpu.memory_space<vmem>>, vector<8x256xf32>,
    %c0_i32_6 = arith.constant 0 : i32
    %7 = arith.cmpi eq, %arg0, %c0_i32_6 : i32
    %8 = arith.extui %7 : i1 to i32
    %c0_i32_7 = arith.constant 0 : i32
    %9 = arith.cmpi ne, %8, %c0_i32_7 : i32
    scf.if %9 {
      %c0_8 = arith.constant 0 : index
      %c0_9 = arith.constant 0 : index
      %10 = vector.load %arg3[%c0_8, %c0_9] : memref<8x256xf32, #tpu.memory_space<vmem>>, vector<8x256xf32>
      %cst = arith.constant dense<0.000000e+00> : vector<8xf32>
      %11 = vector.multi_reduction <add>, %10, %cst [1] : vector<8x256xf32> to vector<8xf32>
      %12 = vector.shape_cast %11 : vector<8xf32> to vector<8x1xf32>
      %cst_10 = arith.constant 3.906250e-03 : f32
      %13 = vector.broadcast %cst_10 : f32 to vector<8x1xf32>
      %14 = arith.mulf %12, %13 : vector<8x1xf32>
      %c0_11 = arith.constant 0 : index
      %c0_12 = arith.constant 0 : index
      %15 = vector.load %arg2[%c0_11, %c0_12] : memref<8x1xf32, #tpu.memory_space<vmem>>, vector<8x1xf32>
      tpu.vector_store %arg2[%c0_11, %c0_12], %14 {strides = array<i32>} : memref<8x1xf32, #tpu.memory_space<vmem>>, vector<8x1xf32>,
    } else {
    }
    return
  }
  func.func @transform_0(%arg0: i32) -> (i32, i32) {
    %c0_i32 = arith.constant 0 : i32
    %c0_i32_0 = arith.constant 0 : i32
    return %c0_i32, %arg0 : i32, i32
  }
  func.func @transform_1(%arg0: i32) -> (i32, i32) {
    %c0_i32 = arith.constant 0 : i32
    %c0_i32_0 = arith.constant 0 : i32
    %c0_i32_1 = arith.constant 0 : i32
    return %c0_i32, %c0_i32_0 : i32, i32
  }
}

</mosaic_0001>

<llo_original>
// kernel: tpu_custom_call.1
$region0: #{tpu_custom_call.1}
  #allocation0 [shape = 'u32[]', space=smem, size = 0x4, offset = 0x4, fixed_abs, tag = 'smem constant byte address 0x4 - core index']
  #allocation1 [shape = 'u32[144,128]{1,0:T(1,128)}', space=vmem, size = 0x12000, scoped, tag = 'internal scratch']
  #allocation2 [shape = 'f32[8,256]{1,0:T(8,128)}', space=vmem, size = 0x2000, scoped, tag = 'scratch operand']
  %s0 = inlined_call_operand.hbm [shape: f32[8,256], index: 0, kind: input, shape index: {}]
  %s1 = inlined_call_operand.vmem [shape: f32[8,1], index: 1, kind: output, shape index: {}]
  %s2 = sld [smem:[#allocation0]]
  $region26: #{tpu_custom_call.1} parent=0
    _
  %s4 = ssub.s32 1, %s2
  %s5 = scalar_select 0, %s4, %s2
  $region1: #{tpu_custom_call.1} parent=0
    #allocation3 [shape = 'u8[8192]{0}', space=vmem, size = 0x2000, scoped, tag = 'input window, operand 0, single buffered']
    #allocation4 [shape = 's32[1]{0}', space=sflag, size = 0x4, scoped, tag = 'scoped memory for tpu_custom_call.1']
    %6 = vsyncpa [#allocation4], 0
    // Predicated region
    $region2: #{tpu_custom_call.1} parent=1 // pred_check
      _
    $region3: #{tpu_custom_call.1} parent=1 // pred_check_branch
      %8 = sbr.rel (0) target = $region5
    $region4: #{tpu_custom_call.1} parent=1 // pred_region
      %s10 = ssub.s32 256, 256
      %11 = vsyncadd [#allocation4], %s10
      %s13 = sshll.u32 [#allocation3], 4
      %s14 = int_to_ptr.vmem [resolvable:$true] %s13
      %16 = dma.hbm_to_vmem [thread:$0]  %s0, 256, %s14, [#allocation4]
    $region5: #{tpu_custom_call.1} parent=1 // pred_fallthru
      _
    // Predicated region
    $region6: #{tpu_custom_call.1} parent=1 // pred_check
      _
    $region7: #{tpu_custom_call.1} parent=1 // pred_check_branch
      %18 = sbr.rel (0) target = $region9
    $region8: #{tpu_custom_call.1} parent=1 // pred_region
      %19 = dma.done [#allocation4], 256
    $region9: #{tpu_custom_call.1} parent=1 // pred_fallthru
      _
    %p20 = scmp.eq.s32.totalorder 0, 0
    // Predicated region
    $region10: #{tpu_custom_call.1} parent=1 // pred_check
      %p21 = pneg %p20
    $region11: #{tpu_custom_call.1} parent=1 // pred_check_branch
      %23 = sbr.rel (%p21) target = $region13
    $region12: #{tpu_custom_call.1} parent=1 // pred_region
      %24 = vst [vmem:[#allocation2] sm:$0xff] 0.0
      %25 = vst [vmem:[#allocation2 + $0x8] sm:$0xff] 0.0
    $region13: #{tpu_custom_call.1} parent=1 // pred_fallthru
      _
    %v26 = vld [vmem:[#allocation3] sm:$0xff]
    %v27 = vld [vmem:[#allocation3 + $0x8] sm:$0xff]
    %v28 = vld [vmem:[#allocation2] sm:$0xff]
    %v29 = vld [vmem:[#allocation2 + $0x8] sm:$0xff]
    %v30 = vadd.f32 %v28, %v26
    %v31 = vadd.f32 %v29, %v27
    %32 = vst [vmem:[#allocation2] sm:$0xff] %v30
    %33 = vst [vmem:[#allocation2 + $0x8] sm:$0xff] %v31
    // Predicated region
    $region14: #{tpu_custom_call.1} parent=1 // pred_check
      %p34 = pneg %p20
    $region15: #{tpu_custom_call.1} parent=1 // pred_check_branch
      %36 = sbr.rel (%p34) target = $region17
    $region16: #{tpu_custom_call.1} parent=1 // pred_region
      %v37 = vld [vmem:[#allocation2] sm:$0xff]
      %v38 = vld [vmem:[#allocation2 + $0x8] sm:$0xff]
      %v39 = vadd.f32 %v37, %v38
      %40 = vadd.xlane.f32.xlu0 %v39
      %v41 = vpop.xlane.xlu0 %40
      %v42 = vmul.f32 %v41, 0.00390625
      %vm43 = vcmask 7168
      %44 = vst.msk [vmem:[%s1] sm:$0xff] %vm43, %v42
    $region17: #{tpu_custom_call.1} parent=1 // pred_fallthru
      _
    // Predicated region
    $region18: #{tpu_custom_call.1} parent=1 // pred_check
      _
    $region19: #{tpu_custom_call.1} parent=1 // pred_check_branch
      %46 = sbr.rel (0) target = $region21
    $region20: #{tpu_custom_call.1} parent=1 // pred_region
      _
    $region21: #{tpu_custom_call.1} parent=1 // pred_fallthru
      _
    // Predicated region
    $region22: #{tpu_custom_call.1} parent=1 // pred_check
      _
    $region23: #{tpu_custom_call.1} parent=1 // pred_check_branch
      %48 = sbr.rel (0) target = $region25
    $region24: #{tpu_custom_call.1} parent=1 // pred_region
      _
    $region25: #{tpu_custom_call.1} parent=1 // pred_fallthru
      _
    %49 = vsyncpa [#allocation4], 1

</llo_original>
